<compile_context>
chip_gen: v5e
topology: v5e:2x2
jax: 0.10.0
libtpu: 0.0.40
codegen_flags: <defaults>
</compile_context>

<pallas_src>
import functools

import jax
import jax.numpy as jnp
from jax.experimental import pallas as pl
from jax.experimental.pallas import tpu as pltpu


def _only_allow_a_kernel(xa_ref, out_ref, o_ref, *, factor):
    # xa_ref:  (1, 1, TL)  channel-0 ("is A") indicator, lane-dense along L
    # out_ref: (1, K, TL)  logits, lane-dense along L
    # o_ref:   (1, K, TL)
    correction = ((1.0 - xa_ref[...].astype(jnp.float32)) * (-factor)).astype(
        o_ref.dtype
    )
    # Broadcast over the sublane (K) axis.
    o_ref[...] = out_ref[...] + correction


def _pick_l_tile(L):
    """Largest lane tile in {2048, 1024, 512, 256, 128} that divides L."""
    for tl in (2048, 1024, 512, 256, 128):
        if L % tl == 0:
            return tl
    return L  # short / irregular sequences: one full-L block (legal: full dim)


def only_allow_a_nkl(x_a, out_nkl, factor):
    """Core Pallas kernel, channels-second layout.

    x_a:     (N, 1, L)  -- x[:, :, 0] reshaped
    out_nkl: (N, K, L)
    returns  (N, K, L)
    """
    N, one, L = x_a.shape
    N2, K, L2 = out_nkl.shape
    assert N == N2 and L == L2 and one == 1

    TL = _pick_l_tile(L)
    grid = (N, L // TL)
    kernel = functools.partial(_only_allow_a_kernel, factor=float(factor))

    return pl.pallas_call(
        kernel,
        out_shape=jax.ShapeDtypeStruct((N, K, L), out_nkl.dtype),
        grid=grid,
        in_specs=[
            pl.BlockSpec((1, 1, TL), lambda b, l: (b, 0, l)),
            pl.BlockSpec((1, K, TL), lambda b, l: (b, 0, l)),
        ],
        out_specs=pl.BlockSpec((1, K, TL), lambda b, l: (b, 0, l)),
        # In-place update of `out` (no extra HBM output allocation).
        input_output_aliases={1: 0},
        compiler_params=pltpu.CompilerParams(
            dimension_semantics=("parallel", "parallel"),
        ),
    )(x_a, out_nkl)


@functools.partial(jax.jit, static_argnums=(2,))
def only_allow_a(x, out, factor):
    """PyTorch-layout wrapper: x (N, L, C), out (N, L, K) -> (N, L, K).

    The transposes below are wrapper-side layout plumbing; in a real model the
    surrounding code would already keep a channels-second (N, K, L) layout so
    they disappear entirely.
    """
    N, L, C = x.shape
    x_a = x[:, :, 0].reshape(N, 1, L)              # only channel 0 is needed
    out_t = jnp.transpose(out, (0, 2, 1))          # (N, K, L), lane-dense L
    o_t = only_allow_a_nkl(x_a, out_t, factor)
    return jnp.transpose(o_t, (0, 2, 1))           # back to (N, L, K)


if __name__ == "__main__":
    key = jax.random.PRNGKey(0)
    k1, k2, k3, k4 = jax.random.split(key, 4)

    factor = 2.5

    # --- Test 1: f32, lane-tiled path (L multiple of 128) -------------------
    N, L, C, K = 2, 512, 4, 3
    idx = jax.random.randint(k1, (N, L), 0, C)
    x = jax.nn.one_hot(idx, C, dtype=jnp.float32)               # (N, L, C)
    out = jax.random.normal(k2, (N, L, K), dtype=jnp.float32)   # (N, L, K)

    result = jax.block_until_ready(only_allow_a(x, out, factor))

    is_a = x[:, :, 0:1]
    ref = out + (1.0 - is_a) * (-factor)
    assert jnp.allclose(result, ref, atol=1e-6), "f32 mismatch vs reference"

    # --- Test 2: bf16 output, short-L fallback path --------------------------
    N2_, L2_, C2_, K2_ = 2, 16, 4, 3
    idx2 = jax.random.randint(k3, (N2_, L2_), 0, C2_)
    x2 = jax.nn.one_hot(idx2, C2_, dtype=jnp.float32)
    out2 = jax.random.normal(k4, (N2_, L2_, K2_), dtype=jnp.bfloat16)

    result2 = jax.block_until_ready(only_allow_a(x2, out2, factor))

    is_a2 = x2[:, :, 0:1]
    ref2 = out2 + ((1.0 - is_a2) * (-factor)).astype(jnp.bfloat16)
    assert jnp.allclose(
        result2.astype(jnp.float32), ref2.astype(jnp.float32), atol=1e-2, rtol=1e-2
    ), "bf16 mismatch vs reference"

    print("KERNEL_OK")
</pallas_src>

<mosaic_0001>
module attributes {stable_mosaic.version = 11 : i64} {
  func.func @_only_allow_a_kernel(%arg0: i32, %arg1: i32, %arg2: memref<1x1x512xf32, #tpu.memory_space<vmem>>, %arg3: memref<1x3x512xf32, #tpu.memory_space<vmem>>, %arg4: memref<1x3x512xf32, #tpu.memory_space<vmem>>) attributes {dimension_semantics = [#tpu.dimension_semantics<parallel>, #tpu.dimension_semantics<parallel>], iteration_bounds = array<i64: 2, 1>, scalar_prefetch = 0 : i64, scratch_operands = 0 : i64, tpu.core_type = #tpu.core_type<tc>, window_params = [{transform_indices = @transform_0, window_bounds = array<i64: 1, 1, 512>}, {transform_indices = @transform_1, window_bounds = array<i64: 1, 3, 512>}, {transform_indices = @transform_2, window_bounds = array<i64: 1, 3, 512>}]} {
    %c0 = arith.constant 0 : index
    %c0_0 = arith.constant 0 : index
    %c0_1 = arith.constant 0 : index
    %0 = vector.load %arg2[%c0, %c0_0, %c0_1] : memref<1x1x512xf32, #tpu.memory_space<vmem>>, vector<1x1x512xf32>
    %cst = arith.constant 1.000000e+00 : f32
    %1 = vector.broadcast %cst : f32 to vector<1x1x512xf32>
    %2 = arith.subf %1, %0 : vector<1x1x512xf32>
    %cst_2 = arith.constant -2.500000e+00 : f32
    %3 = vector.broadcast %cst_2 : f32 to vector<1x1x512xf32>
    %4 = arith.mulf %2, %3 : vector<1x1x512xf32>
    %c0_3 = arith.constant 0 : index
    %c0_4 = arith.constant 0 : index
    %c0_5 = arith.constant 0 : index
    %5 = vector.load %arg3[%c0_3, %c0_4, %c0_5] : memref<1x3x512xf32, #tpu.memory_space<vmem>>, vector<1x3x512xf32>
    %6 = vector.broadcast %4 : vector<1x1x512xf32> to vector<1x3x512xf32>
    %7 = arith.addf %5, %6 : vector<1x3x512xf32>
    %c0_6 = arith.constant 0 : index
    %c0_7 = arith.constant 0 : index
    %c0_8 = arith.constant 0 : index
    %8 = vector.load %arg4[%c0_6, %c0_7, %c0_8] : memref<1x3x512xf32, #tpu.memory_space<vmem>>, vector<1x3x512xf32>
    tpu.vector_store %arg4[%c0_6, %c0_7, %c0_8], %7 {strides = array<i32>} : memref<1x3x512xf32, #tpu.memory_space<vmem>>, vector<1x3x512xf32>,
    return
  }
  func.func @transform_0(%arg0: i32, %arg1: i32) -> (i32, i32, i32) {
    %c0_i32 = arith.constant 0 : i32
    %c0_i32_0 = arith.constant 0 : i32
    return %arg0, %c0_i32, %arg1 : i32, i32, i32
  }
  func.func @transform_1(%arg0: i32, %arg1: i32) -> (i32, i32, i32) {
    %c0_i32 = arith.constant 0 : i32
    %c0_i32_0 = arith.constant 0 : i32
    return %arg0, %c0_i32, %arg1 : i32, i32, i32
  }
  func.func @transform_2(%arg0: i32, %arg1: i32) -> (i32, i32, i32) {
    %c0_i32 = arith.constant 0 : i32
    %c0_i32_0 = arith.constant 0 : i32
    return %arg0, %c0_i32, %arg1 : i32, i32, i32
  }
}

</mosaic_0001>

<llo_original>
// kernel: only_allow_a.1
$region0: #{only_allow_a.1}
  #allocation0 [shape = 'u32[]', space=smem, size = 0x4, offset = 0x4, fixed_abs, tag = 'smem constant byte address 0x4 - core index']
  #allocation1 [shape = 'u32[72,128]{1,0:T(1,128)}', space=vmem, size = 0x9000, scoped, tag = 'internal scratch']
  %s0 = inlined_call_operand.vmem [shape: f32[2,1,512], index: 0, kind: input, shape index: {}]
  %s1 = inlined_call_operand.vmem [shape: f32[2,3,512], index: 1, kind: input, shape index: {}, may-alias: {1,2}]
  %s2 = inlined_call_operand.vmem [shape: f32[2,3,512], index: 2, kind: output, shape index: {}, may-alias: {1,2}]
  %s3 = sld [smem:[#allocation0]]
  $region41: #{only_allow_a.1} parent=0
    _
  %s5 = ssub.s32 1, %s3
  %s6 = scalar_select 0, %s5, %s3
  loop: start=0, step=1, limit=4
  $region2: #{only_allow_a.1} parent=0 // loop_pre_header
    _
  $region3: #{only_allow_a.1} parent=0 // loop_header
    %s8 = sphi 0, %s12
    %p9 = scmp.ge.s32.totalorder %s8, 4
    %s15 = sphi 0, %s27
    %s16 = sphi 0, %s23
    %s17 = sphi 0, %s15
    %s18 = sphi 0, %s16
    %s19 = sphi 0, %s17
    %s20 = sphi 0, %s18
    %s32 = sphi 0, %s34
    %s35 = sphi 0, %s32
    %s36 = sphi 0, %s35
    %s52 = sphi 0, %s36
    %s60 = sphi 0, %s62
    %s63 = sphi 0, %s60
    %s64 = sphi 0, %s63
    %s80 = sphi 0, %s64
    %s88 = sphi 0, %s90
    %s91 = sphi 0, %s88
    %s92 = sphi 0, %s91
    %s108 = sphi 0, %s92
  $region4: #{only_allow_a.1} parent=0 // loop_header_branch
    %11 = sbr.rel (%p9) target = $region8
  $region5: #{only_allow_a.1} parent=0 // loop_body
    %s13 = ssub.s32 %s8, 1
    %s14 = ssub.s32 %s8, 2
    %s21 = sadd.s32 1, %s16
    %p22 = scmp.ge.s32.totalorder %s21, 1
    %s23 = scalar_select %p22, 0, %s21
    %s24 = sadd.s32 1, %s15
    %s25 = scalar_select %p22, %s24, %s15
    %p26 = scmp.ge.s32.totalorder %s25, 2
    %s27 = scalar_select %p26, 0, %s25
    %s28 = ssub.s32 %s15, %s27
    %s29 = ssub.s32 %s16, %s23
    %s30 = sor.u32 %s28, %s29
    %p31 = scmp.eq.s32.totalorder %s30, 0
    %s33 = sadd.s32 %s32, 1
    %s34 = scalar_select %p31, %s32, %s33
    %p37 = pneg %p31
    %p38 = scmp.eq.s32.totalorder %s8, 1
    %p39 = por %p37, %p38
    %p40 = scmp.ne.s32.totalorder %s32, %s35
    %p41 = scmp.eq.s32.totalorder %s8, 0
    %p42 = por %p40, %p41
    %p43 = scmp.ne.s32.totalorder %s32, %s35
    %p44 = scmp.eq.s32.totalorder %s13, 1
    %p45 = por %p43, %p44
    %p46 = scmp.ne.s32.totalorder %s35, %s36
    %p47 = scmp.eq.s32.totalorder %s13, 0
    %p48 = por %p46, %p47
    %p49 = scmp.ne.s32.totalorder %s35, %s36
    %p50 = scmp.eq.s32.totalorder %s14, 1
    %p51 = por %p49, %p50
    %p53 = scmp.ne.s32.totalorder %s36, %s52
    %p54 = scmp.eq.s32.totalorder %s14, 0
    %p55 = por %p53, %p54
    %s56 = ssub.s32 %s15, %s27
    %s57 = ssub.s32 %s16, %s23
    %s58 = sor.u32 %s56, %s57
    %p59 = scmp.eq.s32.totalorder %s58, 0
    %s61 = sadd.s32 %s60, 1
    %s62 = scalar_select %p59, %s60, %s61
    %p65 = pneg %p59
    %p66 = scmp.eq.s32.totalorder %s8, 1
    %p67 = por %p65, %p66
    %p68 = scmp.ne.s32.totalorder %s60, %s63
    %p69 = scmp.eq.s32.totalorder %s8, 0
    %p70 = por %p68, %p69
    %p71 = scmp.ne.s32.totalorder %s60, %s63
    %p72 = scmp.eq.s32.totalorder %s13, 1
    %p73 = por %p71, %p72
    %p74 = scmp.ne.s32.totalorder %s63, %s64
    %p75 = scmp.eq.s32.totalorder %s13, 0
    %p76 = por %p74, %p75
    %p77 = scmp.ne.s32.totalorder %s63, %s64
    %p78 = scmp.eq.s32.totalorder %s14, 1
    %p79 = por %p77, %p78
    %p81 = scmp.ne.s32.totalorder %s64, %s80
    %p82 = scmp.eq.s32.totalorder %s14, 0
    %p83 = por %p81, %p82
    %s84 = ssub.s32 %s15, %s27
    %s85 = ssub.s32 %s16, %s23
    %s86 = sor.u32 %s84, %s85
    %p87 = scmp.eq.s32.totalorder %s86, 0
    %s89 = sadd.s32 %s88, 1
    %s90 = scalar_select %p87, %s88, %s89
    %p93 = pneg %p87
    %p94 = scmp.eq.s32.totalorder %s8, 1
    %p95 = por %p93, %p94
    %p96 = scmp.ne.s32.totalorder %s88, %s91
    %p97 = scmp.eq.s32.totalorder %s8, 0
    %p98 = por %p96, %p97
    %p99 = scmp.ne.s32.totalorder %s88, %s91
    %p100 = scmp.eq.s32.totalorder %s13, 1
    %p101 = por %p99, %p100
    %p102 = scmp.ne.s32.totalorder %s91, %s92
    %p103 = scmp.eq.s32.totalorder %s13, 0
    %p104 = por %p102, %p103
    %p105 = scmp.ne.s32.totalorder %s91, %s92
    %p106 = scmp.eq.s32.totalorder %s14, 1
    %p107 = por %p105, %p106
    %p109 = scmp.ne.s32.totalorder %s92, %s108
    %p110 = scmp.eq.s32.totalorder %s14, 0
    %p111 = por %p109, %p110
    %p112 = scmp.le.s32.totalorder 1, %s8
    %p113 = scmp.lt.s32.totalorder %s8, 3
    %p114 = pnand %p112, %p113
    %p115 = pneg %p114
    // Predicated region
    $region9: #{only_allow_a.1} parent=5 // pred_check
      _
    $region10: #{only_allow_a.1} parent=5 // pred_check_branch
      %117 = sbr.rel (%p114) target = $region12
    $region11: #{only_allow_a.1} parent=5 // pred_region
      %s118 = ssub.s32 %s8, 1
    $region12: #{only_allow_a.1} parent=5 // pred_fallthru
      _
    %p119 = scmp.lt.s32.totalorder %s8, 2
    // Predicated region
    $region13: #{only_allow_a.1} parent=5 // pred_check
      %p120 = pneg %p119
    $region14: #{only_allow_a.1} parent=5 // pred_check_branch
      %122 = sbr.rel (%p120) target = $region16
    $region15: #{only_allow_a.1} parent=5 // pred_region
      // Predicated region
      $region17: #{only_allow_a.1} parent=15 // pred_check
        %p123 = pneg %p42
      $region18: #{only_allow_a.1} parent=15 // pred_check_branch
        %125 = sbr.rel (%p123) target = $region20
      $region19: #{only_allow_a.1} parent=15 // pred_region
        %s126 = smul.u32 4, %s16
        %p127 = scmp.lt.s32.totalorder %s15, 1
        %s128 = scalar_select %p127, %s15, 1
        %p129 = scmp.lt.s32.totalorder %s126, 3
        %s130 = scalar_select %p129, %s126, 3
        %s131 = smul.addr %s128, 4
        %s132 = sadd.s32 %s130, %s131
        %s133 = scalar_lea.vmem %s0, %s132
        %s134 = smul.u32 4, %s16
      $region20: #{only_allow_a.1} parent=15 // pred_fallthru
        _
      // Predicated region
      $region21: #{only_allow_a.1} parent=15 // pred_check
        %p135 = pneg %p70
      $region22: #{only_allow_a.1} parent=15 // pred_check_branch
        %137 = sbr.rel (%p135) target = $region24
      $region23: #{only_allow_a.1} parent=15 // pred_region
        %s138 = smul.u32 4, %s16
        %p139 = scmp.lt.s32.totalorder %s15, 1
        %s140 = scalar_select %p139, %s15, 1
        %p141 = scmp.lt.s32.totalorder %s138, 3
        %s142 = scalar_select %p141, %s138, 3
        %s143 = smul.addr %s140, 4
        %s144 = sadd.s32 %s142, %s143
        %s145 = smul.addr %s144, 4
        %s146 = scalar_lea.vmem %s1, %s145
        %s147 = smul.u32 4, %s16
      $region24: #{only_allow_a.1} parent=15 // pred_fallthru
        _
    $region16: #{only_allow_a.1} parent=5 // pred_fallthru
      _
    %p148 = scmp.le.s32.totalorder 1, %s8
    %p149 = scmp.lt.s32.totalorder %s8, 3
    %p150 = pnand %p148, %p149
    %p151 = pneg %p150
    // Predicated region
    $region25: #{only_allow_a.1} parent=5 // pred_check
      _
    $region26: #{only_allow_a.1} parent=5 // pred_check_branch
      %153 = sbr.rel (%p150) target = $region28
    $region27: #{only_allow_a.1} parent=5 // pred_region
      %s154 = ssub.s32 %s8, 1
      %s155 = smul.u32 4, %s18
      %p156 = scmp.lt.s32.totalorder %s17, 1
      %s157 = scalar_select %p156, %s17, 1
      %p158 = scmp.lt.s32.totalorder %s155, 3
      %s159 = scalar_select %p158, %s155, 3
      %s160 = smul.addr %s157, 4
      %s161 = sadd.s32 %s159, %s160
      %s162 = scalar_lea.vmem %s0, %s161
      %p163 = pneg %p48
      %p164 = pneg %p45
      %s165 = smul.u32 4, %s18
      %p166 = scmp.lt.s32.totalorder %s17, 1
      %s167 = scalar_select %p166, %s17, 1
      %p168 = scmp.lt.s32.totalorder %s165, 3
      %s169 = scalar_select %p168, %s165, 3
      %s170 = smul.addr %s167, 4
      %s171 = sadd.s32 %s169, %s170
      %s172 = smul.addr %s171, 4
      %s173 = scalar_lea.vmem %s1, %s172
      %p174 = pneg %p76
      %p175 = pneg %p73
      %p176 = pneg %p104
      %p177 = pneg %p101
      %s178 = smul.u32 4, %s18
      %p179 = scmp.lt.s32.totalorder %s17, 1
      %s180 = scalar_select %p179, %s17, 1
      %p181 = scmp.lt.s32.totalorder %s178, 3
      %s182 = scalar_select %p181, %s178, 3
      %s183 = smul.addr %s180, 4
      %s184 = sadd.s32 %s182, %s183
      %s185 = smul.addr %s184, 4
      %s186 = scalar_lea.vmem %s2, %s185
      %s187 = smul.u32 4, %s18
      %p188 = scmp.lt.s32.totalorder %s17, 1
      %s189 = scalar_select %p188, %s17, 1
      %p190 = scmp.lt.s32.totalorder %s187, 3
      %s191 = scalar_select %p190, %s187, 3
      %s192 = smul.addr %s189, 4
      %s193 = sadd.s32 %s191, %s192
      %s194 = scalar_lea.vmem %s0, %s193
      %s195 = smul.u32 4, %s18
      %s196 = smul.u32 4, %s18
      %p197 = scmp.lt.s32.totalorder %s17, 1
      %s198 = scalar_select %p197, %s17, 1
      %p199 = scmp.lt.s32.totalorder %s196, 3
      %s200 = scalar_select %p199, %s196, 3
      %s201 = smul.addr %s198, 4
      %s202 = sadd.s32 %s200, %s201
      %s203 = smul.addr %s202, 4
      %s204 = scalar_lea.vmem %s1, %s203
      %s205 = smul.u32 4, %s18
      %s206 = smul.u32 4, %s18
      %p207 = scmp.lt.s32.totalorder %s17, 1
      %s208 = scalar_select %p207, %s17, 1
      %p209 = scmp.lt.s32.totalorder %s206, 3
      %s210 = scalar_select %p209, %s206, 3
      %s211 = smul.addr %s208, 4
      %s212 = sadd.s32 %s210, %s211
      %s213 = smul.addr %s212, 4
      %s214 = scalar_lea.vmem %s2, %s213
      %s215 = smul.u32 4, %s18
      %v216 = vld [vmem:[%s194] sm:$0xf]
      %v217 = vsub.f32 1.0, %v216
      %v218 = vmul.f32 %v217, -2.5
      %v219 = vld [vmem:[%s204] sm:$0x77]
      %v220 = vld [vmem:[%s204 + $0x8] sm:$0x77]
      %v222 = vperm.slane %v218, 0
      %v223 = vperm.slane %v218, 1
      %v224 = vperm.slane %v218, 2
      %v225 = vperm.slane %v218, 3
      %v226 = vrot.slane %v223, 4
      %v227 = vrot.slane %v225, 4
      %vm228 = vcmask 1043456
      %v229 = vsel %vm228, %v222, %v226
      %v230 = vsel %vm228, %v224, %v227
      %v233 = vadd.f32 %v219, %v229
      %v234 = vadd.f32 %v220, %v230
      %235 = vst [vmem:[%s214] sm:$0x77] %v233
      %236 = vst [vmem:[%s214 + $0x8] sm:$0x77] %v234
      %s237 = smul.u32 4, %s18
      %p238 = scmp.lt.s32.totalorder %s17, 1
      %s239 = scalar_select %p238, %s17, 1
      %p240 = scmp.lt.s32.totalorder %s237, 3
      %s241 = scalar_select %p240, %s237, 3
      %s242 = smul.addr %s239, 4
      %s243 = sadd.s32 %s241, %s242
      %s244 = smul.addr %s243, 4
      %s245 = scalar_lea.vmem %s2, %s244
      // Predicated region
      $region29: #{only_allow_a.1} parent=27 // pred_check
        %p246 = pneg %p101
      $region30: #{only_allow_a.1} parent=27 // pred_check_branch
        %248 = sbr.rel (%p246) target = $region32
      $region31: #{only_allow_a.1} parent=27 // pred_region
        %s249 = smul.u32 4, %s18
      $region32: #{only_allow_a.1} parent=27 // pred_fallthru
        _
    $region28: #{only_allow_a.1} parent=5 // pred_fallthru
      _
    %p250 = scmp.le.s32.totalorder 2, %s8
    // Predicated region
    $region33: #{only_allow_a.1} parent=5 // pred_check
      %p251 = pneg %p250
    $region34: #{only_allow_a.1} parent=5 // pred_check_branch
      %253 = sbr.rel (%p251) target = $region36
    $region35: #{only_allow_a.1} parent=5 // pred_region
      %s254 = ssub.s32 %s8, 2
      // Predicated region
      $region37: #{only_allow_a.1} parent=35 // pred_check
        %p255 = pneg %p107
      $region38: #{only_allow_a.1} parent=35 // pred_check_branch
        %257 = sbr.rel (%p255) target = $region40
      $region39: #{only_allow_a.1} parent=35 // pred_region
        %s258 = smul.u32 4, %s20
        %p259 = scmp.lt.s32.totalorder %s19, 1
        %s260 = scalar_select %p259, %s19, 1
        %p261 = scmp.lt.s32.totalorder %s258, 3
        %s262 = scalar_select %p261, %s258, 3
        %s263 = smul.addr %s260, 4
        %s264 = sadd.s32 %s262, %s263
        %s265 = smul.addr %s264, 4
        %s266 = scalar_lea.vmem %s2, %s265
      $region40: #{only_allow_a.1} parent=35 // pred_fallthru
        _
    $region36: #{only_allow_a.1} parent=5 // pred_fallthru
      _
  $region6: #{only_allow_a.1} parent=0 // loop_footer
    %s12 = sadd.s32 1, %s8
  $region7: #{only_allow_a.1} parent=0 // loop_footer_branch
    %7 = sbr.rel target = $region3
  $region8: #{only_allow_a.1} parent=0 // loop_exit
    _

</llo_original>
